<compile_context>
chip_gen: v5e
topology: v5e:2x2
jax: 0.10.0
libtpu: 0.0.40
codegen_flags: <defaults>
</compile_context>

<pallas_src>
import math
from functools import partial

import jax
import jax.numpy as jnp
from jax.experimental import pallas as pl
from jax.experimental.pallas import tpu as pltpu


def _round_up(x, m):
    return (x + m - 1) // m * m


def _lora_linear_kernel(x_ref, wt_ref, b_ref, at_ref, bt_ref, o_ref,
                        acc_ref, xa_ref, *, scaling):
    # x_ref:  (tm, tk)    input tile
    # wt_ref: (tk, tn)    W^T tile
    # b_ref:  (1, tn)     bias tile            (constant across k -> no re-DMA)
    # at_ref: (tk, rank)  A^T tile
    # bt_ref: (rank, tn)  B^T tile             (constant across k -> no re-DMA)
    # o_ref:  (tm, tn)    output tile
    # acc_ref:(tm, tn)    f32 accumulator for x @ W^T
    # xa_ref: (tm, rank)  f32 accumulator for x @ A^T
    k = pl.program_id(2)

    @pl.when(k == 0)
    def _():
        acc_ref[...] = jnp.zeros_like(acc_ref)
        xa_ref[...] = jnp.zeros_like(xa_ref)

    x = x_ref[...]
    acc_ref[...] += jnp.dot(x, wt_ref[...], preferred_element_type=jnp.float32)
    xa_ref[...] += jnp.dot(x, at_ref[...], preferred_element_type=jnp.float32)

    @pl.when(k == pl.num_programs(2) - 1)
    def _():
        # Scale the tiny (tm, rank) intermediate, not the (tm, tn) result.
        lora = jnp.dot(scaling * xa_ref[...],
                       bt_ref[...].astype(jnp.float32),
                       preferred_element_type=jnp.float32)
        out = acc_ref[...] + b_ref[...].astype(jnp.float32) + lora
        o_ref[...] = out.astype(o_ref.dtype)


def lora_linear(x2d, weight, bias, lora_A, lora_B, scaling,
                *, tm=256, tn=256, tk=512):
    """x2d: (M, in_feature) -> (M, out_feature).

    weight: (out, in), bias: (out,), lora_A: (rank, in), lora_B: (out, rank).
    """
    M, in_f = x2d.shape
    out_f = weight.shape[0]
    rank = lora_A.shape[0]

    # Clamp tile sizes for small problems (keep sublane/lane alignment).
    tm = min(tm, _round_up(M, 8))
    tn = min(tn, _round_up(out_f, 128))
    tk = min(tk, _round_up(in_f, 128))

    M_p = _round_up(M, tm)
    N_p = _round_up(out_f, tn)
    K_p = _round_up(in_f, tk)

    # Pad (zeros are neutral for all three matmuls and the bias add); padded
    # rows/cols are sliced off at the end.
    x_p = jnp.pad(x2d, ((0, M_p - M), (0, K_p - in_f)))
    wT = jnp.pad(weight.T, ((0, K_p - in_f), (0, N_p - out_f)))       # (K_p, N_p)
    aT = jnp.pad(lora_A.T, ((0, K_p - in_f), (0, 0)))                 # (K_p, rank)
    bT = jnp.pad(lora_B.T, ((0, 0), (0, N_p - out_f)))                # (rank, N_p)
    b2 = jnp.pad(bias.reshape(1, out_f), ((0, 0), (0, N_p - out_f)))  # (1, N_p)

    grid = (M_p // tm, N_p // tn, K_p // tk)

    itemsize = x2d.dtype.itemsize
    flops = 2 * M_p * K_p * (N_p + rank) + 2 * M_p * rank * N_p
    bytes_accessed = (x_p.size + wT.size + aT.size + bT.size + b2.size
                      + M_p * N_p) * itemsize
    cost = pl.CostEstimate(flops=flops, transcendentals=0,
                           bytes_accessed=bytes_accessed)

    out_p = pl.pallas_call(
        partial(_lora_linear_kernel, scaling=float(scaling)),
        out_shape=jax.ShapeDtypeStruct((M_p, N_p), x2d.dtype),
        grid_spec=pltpu.PrefetchScalarGridSpec(
            num_scalar_prefetch=0,
            grid=grid,
            in_specs=[
                pl.BlockSpec((tm, tk), lambda i, j, k: (i, k)),    # x tile
                pl.BlockSpec((tk, tn), lambda i, j, k: (k, j)),    # W^T tile
                pl.BlockSpec((1, tn), lambda i, j, k: (0, j)),     # bias tile
                pl.BlockSpec((tk, rank), lambda i, j, k: (k, 0)),  # A^T tile
                pl.BlockSpec((rank, tn), lambda i, j, k: (0, j)),  # B^T tile
            ],
            out_specs=pl.BlockSpec((tm, tn), lambda i, j, k: (i, j)),
            scratch_shapes=[
                pltpu.VMEM((tm, tn), jnp.float32),    # base matmul accumulator
                pltpu.VMEM((tm, rank), jnp.float32),  # x @ A^T accumulator
            ],
        ),
        compiler_params=pltpu.CompilerParams(
            dimension_semantics=("parallel", "parallel", "arbitrary"),
            vmem_limit_bytes=64 * 1024 * 1024,
        ),
        cost_estimate=cost,
    )(x_p, wT, b2, aT, bT)

    return out_p[:M, :out_f]


if __name__ == "__main__":
    # Small config consistent with LoRALinear(in=32, out=64, rank=4).
    batch, seq = 2, 8
    in_feature, out_feature, rank = 32, 64, 4
    lora_alpha = 1.0
    scaling = lora_alpha / rank

    key = jax.random.PRNGKey(0)
    kx, kw, kb, ka, kbb = jax.random.split(key, 5)

    # nn.Linear.reset_parameters: U(-1/sqrt(in), 1/sqrt(in)) for W and b.
    bound_w = 1.0 / math.sqrt(in_feature)
    weight = jax.random.uniform(kw, (out_feature, in_feature), jnp.float32,
                                -bound_w, bound_w)
    bias = jax.random.uniform(kb, (out_feature,), jnp.float32, -bound_w, bound_w)

    # lora_A: kaiming-uniform-ish; lora_B is zeros at module init, but we use
    # small random values so the LoRA path is actually exercised.
    lora_A = jax.random.uniform(ka, (rank, in_feature), jnp.float32,
                                -bound_w, bound_w)
    lora_B = 0.02 * jax.random.normal(kbb, (out_feature, rank), jnp.float32)

    x = jax.random.normal(kx, (batch, seq, in_feature), jnp.float32)
    x2d = x.reshape(batch * seq, in_feature)

    y2d = lora_linear(x2d, weight, bias, lora_A, lora_B, scaling)
    y = y2d.reshape(batch, seq, out_feature)
    jax.block_until_ready(y)

    # Pure-JAX reference check.
    ref = (x2d @ weight.T + bias[None, :]
           + scaling * ((x2d @ lora_A.T) @ lora_B.T)
           ).reshape(batch, seq, out_feature)
    assert jnp.allclose(y, ref, atol=1e-5, rtol=1e-5), "mismatch vs reference"

    print("KERNEL_OK")
</pallas_src>

<mosaic_0001>
module attributes {stable_mosaic.version = 11 : i64} {
  func.func @_lora_linear_kernel(%arg0: i32, %arg1: i32, %arg2: i32, %arg3: memref<16x128xf32, #tpu.memory_space<vmem>>, %arg4: memref<128x128xf32, #tpu.memory_space<vmem>>, %arg5: memref<1x128xf32, #tpu.memory_space<vmem>>, %arg6: memref<128x4xf32, #tpu.memory_space<vmem>>, %arg7: memref<4x128xf32, #tpu.memory_space<vmem>>, %arg8: memref<16x128xf32, #tpu.memory_space<vmem>>, %arg9: memref<16x128xf32, #tpu.memory_space<vmem>>, %arg10: memref<16x4xf32, #tpu.memory_space<vmem>>) attributes {dimension_semantics = [#tpu.dimension_semantics<parallel>, #tpu.dimension_semantics<parallel>, #tpu.dimension_semantics<arbitrary>], iteration_bounds = array<i64: 1, 1, 1>, scalar_prefetch = 0 : i64, scratch_operands = 2 : i64, tpu.core_type = #tpu.core_type<tc>, window_params = [{transform_indices = @transform_0, window_bounds = array<i64: 16, 128>}, {transform_indices = @transform_1, window_bounds = array<i64: 128, 128>}, {transform_indices = @transform_2, window_bounds = array<i64: 1, 128>}, {transform_indices = @transform_3, window_bounds = array<i64: 128, 4>}, {transform_indices = @transform_4, window_bounds = array<i64: 4, 128>}, {transform_indices = @transform_5, window_bounds = array<i64: 16, 128>}]} {
    %c0_i32 = arith.constant 0 : i32
    %0 = arith.cmpi eq, %arg2, %c0_i32 : i32
    %1 = arith.extui %0 : i1 to i32
    %c0_i32_0 = arith.constant 0 : i32
    %2 = arith.cmpi ne, %1, %c0_i32_0 : i32
    scf.if %2 {
      %cst_17 = arith.constant 0.000000e+00 : f32
      %17 = vector.broadcast %cst_17 : f32 to vector<16x128xf32>
      %c0_18 = arith.constant 0 : index
      %c0_19 = arith.constant 0 : index
      %18 = vector.load %arg9[%c0_18, %c0_19] : memref<16x128xf32, #tpu.memory_space<vmem>>, vector<16x128xf32>
      tpu.vector_store %arg9[%c0_18, %c0_19], %17 {strides = array<i32>} : memref<16x128xf32, #tpu.memory_space<vmem>>, vector<16x128xf32>,
      %cst_20 = arith.constant 0.000000e+00 : f32
      %19 = vector.broadcast %cst_20 : f32 to vector<16x4xf32>
      %c0_21 = arith.constant 0 : index
      %c0_22 = arith.constant 0 : index
      %20 = vector.load %arg10[%c0_21, %c0_22] : memref<16x4xf32, #tpu.memory_space<vmem>>, vector<16x4xf32>
      tpu.vector_store %arg10[%c0_21, %c0_22], %19 {strides = array<i32>} : memref<16x4xf32, #tpu.memory_space<vmem>>, vector<16x4xf32>,
    } else {
    }
    %c0 = arith.constant 0 : index
    %c0_1 = arith.constant 0 : index
    %3 = vector.load %arg3[%c0, %c0_1] : memref<16x128xf32, #tpu.memory_space<vmem>>, vector<16x128xf32>
    %c0_2 = arith.constant 0 : index
    %c0_3 = arith.constant 0 : index
    %4 = vector.load %arg9[%c0_2, %c0_3] : memref<16x128xf32, #tpu.memory_space<vmem>>, vector<16x128xf32>
    %c0_4 = arith.constant 0 : index
    %c0_5 = arith.constant 0 : index
    %5 = vector.load %arg4[%c0_4, %c0_5] : memref<128x128xf32, #tpu.memory_space<vmem>>, vector<128x128xf32>
    %cst = arith.constant dense<0.000000e+00> : vector<16x128xf32>
    %6 = tpu.matmul %3, %5, %cst {dimension_numbers = #tpu.dot_dimension_numbers<[1], [0], [0], [1], [0, 0, 1, 1], [], []>} : vector<16x128xf32>, vector<128x128xf32>, vector<16x128xf32> -> vector<16x128xf32>
    %7 = arith.addf %4, %6 : vector<16x128xf32>
    %c0_6 = arith.constant 0 : index
    %c0_7 = arith.constant 0 : index
    %8 = vector.load %arg9[%c0_6, %c0_7] : memref<16x128xf32, #tpu.memory_space<vmem>>, vector<16x128xf32>
    tpu.vector_store %arg9[%c0_6, %c0_7], %7 {strides = array<i32>} : memref<16x128xf32, #tpu.memory_space<vmem>>, vector<16x128xf32>,
    %c0_8 = arith.constant 0 : index
    %c0_9 = arith.constant 0 : index
    %9 = vector.load %arg10[%c0_8, %c0_9] : memref<16x4xf32, #tpu.memory_space<vmem>>, vector<16x4xf32>
    %c0_10 = arith.constant 0 : index
    %c0_11 = arith.constant 0 : index
    %10 = vector.load %arg6[%c0_10, %c0_11] : memref<128x4xf32, #tpu.memory_space<vmem>>, vector<128x4xf32>
    %cst_12 = arith.constant dense<0.000000e+00> : vector<16x4xf32>
    %11 = tpu.matmul %3, %10, %cst_12 {dimension_numbers = #tpu.dot_dimension_numbers<[1], [0], [0], [1], [0, 0, 1, 1], [], []>} : vector<16x128xf32>, vector<128x4xf32>, vector<16x4xf32> -> vector<16x4xf32>
    %12 = arith.addf %9, %11 : vector<16x4xf32>
    %c0_13 = arith.constant 0 : index
    %c0_14 = arith.constant 0 : index
    %13 = vector.load %arg10[%c0_13, %c0_14] : memref<16x4xf32, #tpu.memory_space<vmem>>, vector<16x4xf32>
    tpu.vector_store %arg10[%c0_13, %c0_14], %12 {strides = array<i32>} : memref<16x4xf32, #tpu.memory_space<vmem>>, vector<16x4xf32>,
    %c0_i32_15 = arith.constant 0 : i32
    %14 = arith.cmpi eq, %arg2, %c0_i32_15 : i32
    %15 = arith.extui %14 : i1 to i32
    %c0_i32_16 = arith.constant 0 : i32
    %16 = arith.cmpi ne, %15, %c0_i32_16 : i32
    scf.if %16 {
      %c0_17 = arith.constant 0 : index
      %c0_18 = arith.constant 0 : index
      %17 = vector.load %arg10[%c0_17, %c0_18] : memref<16x4xf32, #tpu.memory_space<vmem>>, vector<16x4xf32>
      %cst_19 = arith.constant 2.500000e-01 : f32
      %18 = vector.broadcast %cst_19 : f32 to vector<16x4xf32>
      %19 = arith.mulf %18, %17 : vector<16x4xf32>
      %c0_20 = arith.constant 0 : index
      %c0_21 = arith.constant 0 : index
      %20 = vector.load %arg7[%c0_20, %c0_21] : memref<4x128xf32, #tpu.memory_space<vmem>>, vector<4x128xf32>
      %cst_22 = arith.constant dense<0.000000e+00> : vector<16x128xf32>
      %21 = tpu.matmul %19, %20, %cst_22 {dimension_numbers = #tpu.dot_dimension_numbers<[1], [0], [0], [1], [0, 0, 1, 1], [], []>} : vector<16x4xf32>, vector<4x128xf32>, vector<16x128xf32> -> vector<16x128xf32>
      %c0_23 = arith.constant 0 : index
      %c0_24 = arith.constant 0 : index
      %22 = vector.load %arg9[%c0_23, %c0_24] : memref<16x128xf32, #tpu.memory_space<vmem>>, vector<16x128xf32>
      %c0_25 = arith.constant 0 : index
      %c0_26 = arith.constant 0 : index
      %23 = vector.load %arg5[%c0_25, %c0_26] : memref<1x128xf32, #tpu.memory_space<vmem>>, vector<1x128xf32>
      %24 = vector.broadcast %23 : vector<1x128xf32> to vector<16x128xf32>
      %25 = arith.addf %22, %24 : vector<16x128xf32>
      %26 = arith.addf %25, %21 : vector<16x128xf32>
      %c0_27 = arith.constant 0 : index
      %c0_28 = arith.constant 0 : index
      %27 = vector.load %arg8[%c0_27, %c0_28] : memref<16x128xf32, #tpu.memory_space<vmem>>, vector<16x128xf32>
      tpu.vector_store %arg8[%c0_27, %c0_28], %26 {strides = array<i32>} : memref<16x128xf32, #tpu.memory_space<vmem>>, vector<16x128xf32>,
    } else {
    }
    return
  }
  func.func @transform_0(%arg0: i32, %arg1: i32, %arg2: i32) -> (i32, i32) {
    %c0_i32 = arith.constant 0 : i32
    return %arg0, %arg2 : i32, i32
  }
  func.func @transform_1(%arg0: i32, %arg1: i32, %arg2: i32) -> (i32, i32) {
    %c0_i32 = arith.constant 0 : i32
    return %arg2, %arg1 : i32, i32
  }
  func.func @transform_2(%arg0: i32, %arg1: i32, %arg2: i32) -> (i32, i32) {
    %c0_i32 = arith.constant 0 : i32
    %c0_i32_0 = arith.constant 0 : i32
    return %c0_i32, %arg1 : i32, i32
  }
  func.func @transform_3(%arg0: i32, %arg1: i32, %arg2: i32) -> (i32, i32) {
    %c0_i32 = arith.constant 0 : i32
    %c0_i32_0 = arith.constant 0 : i32
    return %arg2, %c0_i32 : i32, i32
  }
  func.func @transform_4(%arg0: i32, %arg1: i32, %arg2: i32) -> (i32, i32) {
    %c0_i32 = arith.constant 0 : i32
    %c0_i32_0 = arith.constant 0 : i32
    return %c0_i32, %arg1 : i32, i32
  }
  func.func @transform_5(%arg0: i32, %arg1: i32, %arg2: i32) -> (i32, i32) {
    %c0_i32 = arith.constant 0 : i32
    return %arg0, %arg1 : i32, i32
  }
}

</mosaic_0001>

<llo_original>
// kernel: tpu_custom_call.1
$region0: #{tpu_custom_call.1}
  #allocation0 [shape = 'u32[]', space=smem, size = 0x4, offset = 0x4, fixed_abs, tag = 'smem constant byte address 0x4 - core index']
  #allocation1 [shape = 'u32[72,128]{1,0:T(1,128)}', space=vmem, size = 0x9000, scoped, tag = 'internal scratch']
  #allocation2 [shape = 'f32[16,128]{1,0:T(8,128)}', space=vmem, size = 0x2000, scoped, tag = 'scratch operand']
  #allocation3 [shape = 'f32[16,4]{1,0:T(8,128)}', space=vmem, size = 0x2000, scoped, tag = 'scratch operand']
  %s0 = inlined_call_operand.hbm [shape: f32[16,128], index: 0, kind: input, shape index: {}]
  %s1 = inlined_call_operand.vmem [shape: f32[128,128], index: 1, kind: input, shape index: {}]
  %s2 = inlined_call_operand.vmem [shape: f32[1,128], index: 2, kind: input, shape index: {}]
  %s3 = inlined_call_operand.vmem [shape: f32[128,4], index: 3, kind: input, shape index: {}]
  %s4 = inlined_call_operand.vmem [shape: f32[4,128], index: 4, kind: input, shape index: {}]
  %s5 = inlined_call_operand.hbm [shape: f32[16,128], index: 5, kind: output, shape index: {}]
  %s6 = sld [smem:[#allocation0]]
  $region42: #{tpu_custom_call.1} parent=0
    _
  %s8 = ssub.s32 1, %s6
  %s9 = scalar_select 0, %s8, %s6
  $region1: #{tpu_custom_call.1} parent=0
    #allocation4 [shape = 'u8[8192]{0}', space=vmem, size = 0x2000, scoped, tag = 'input window, operand 0, single buffered']
    #allocation5 [shape = 's32[1]{0}', space=sflag, size = 0x4, scoped, tag = 'scoped memory for tpu_custom_call.1']
    #allocation6 [shape = 's32[1]{0}', space=sflag, size = 0x4, scoped, tag = 'scoped memory for tpu_custom_call.1']
    #allocation7 [shape = 'u8[8192]{0}', space=vmem, size = 0x2000, scoped, tag = 'output window, operand 0, single buffered']
    %10 = vsyncpa [#allocation5], 0
    %11 = vsyncpa [#allocation6], 0
    // Predicated region
    $region2: #{tpu_custom_call.1} parent=1 // pred_check
      _
    $region3: #{tpu_custom_call.1} parent=1 // pred_check_branch
      %13 = sbr.rel (0) target = $region5
    $region4: #{tpu_custom_call.1} parent=1 // pred_region
      %15 = vsyncadd [#allocation5], 0
      %s16 = sshll.u32 %s0, 4
      %s17 = int_to_ptr.hbm [resolvable:$true] %s16
      %s18 = sshll.u32 [#allocation4], 4
      %s19 = int_to_ptr.vmem [resolvable:$true] %s18
      %24 = dma.hbm_to_vmem [thread:$0]  %s17, 256, %s19, [#allocation5], 128, 128, 8
    $region5: #{tpu_custom_call.1} parent=1 // pred_fallthru
      _
    // Predicated region
    $region6: #{tpu_custom_call.1} parent=1 // pred_check
      _
    $region7: #{tpu_custom_call.1} parent=1 // pred_check_branch
      %26 = sbr.rel (0) target = $region9
    $region8: #{tpu_custom_call.1} parent=1 // pred_region
      _
    $region9: #{tpu_custom_call.1} parent=1 // pred_fallthru
      _
    // Predicated region
    $region10: #{tpu_custom_call.1} parent=1 // pred_check
      _
    $region11: #{tpu_custom_call.1} parent=1 // pred_check_branch
      %28 = sbr.rel (0) target = $region13
    $region12: #{tpu_custom_call.1} parent=1 // pred_region
      _
    $region13: #{tpu_custom_call.1} parent=1 // pred_fallthru
      _
    // Predicated region
    $region14: #{tpu_custom_call.1} parent=1 // pred_check
      _
    $region15: #{tpu_custom_call.1} parent=1 // pred_check_branch
      %30 = sbr.rel (0) target = $region17
    $region16: #{tpu_custom_call.1} parent=1 // pred_region
      _
    $region17: #{tpu_custom_call.1} parent=1 // pred_fallthru
      _
    // Predicated region
    $region18: #{tpu_custom_call.1} parent=1 // pred_check
      _
    $region19: #{tpu_custom_call.1} parent=1 // pred_check_branch
      %32 = sbr.rel (0) target = $region21
    $region20: #{tpu_custom_call.1} parent=1 // pred_region
      _
    $region21: #{tpu_custom_call.1} parent=1 // pred_fallthru
      _
    // Predicated region
    $region22: #{tpu_custom_call.1} parent=1 // pred_check
      _
    $region23: #{tpu_custom_call.1} parent=1 // pred_check_branch
      %34 = sbr.rel (0) target = $region25
    $region24: #{tpu_custom_call.1} parent=1 // pred_region
      %36 = dma.done [#allocation5], 256
    $region25: #{tpu_custom_call.1} parent=1 // pred_fallthru
      _
    %p37 = scmp.eq.s32.totalorder 0, 0
    // Predicated region
    $region26: #{tpu_custom_call.1} parent=1 // pred_check
      %p38 = pneg %p37
    $region27: #{tpu_custom_call.1} parent=1 // pred_check_branch
      %40 = sbr.rel (%p38) target = $region29
    $region28: #{tpu_custom_call.1} parent=1 // pred_region
      %41 = vst [vmem:[#allocation2] sm:$0xff] 0.0
      %42 = vst [vmem:[#allocation2 + $0x8] sm:$0xff] 0.0
      %vm43 = vcmask 31744
      %44 = vst.msk [vmem:[#allocation3] sm:$0xff] %vm43, 0.0
      %45 = vst.msk [vmem:[#allocation3 + $0x8] sm:$0xff] %vm43, 0.0
    $region29: #{tpu_custom_call.1} parent=1 // pred_fallthru
      _
    %v46 = vld [vmem:[#allocation4] sm:$0xff]
    %v47 = vld [vmem:[#allocation4 + $0x8] sm:$0xff]
    %v48 = vld [vmem:[#allocation2] sm:$0xff]
    %v49 = vld [vmem:[#allocation2 + $0x8] sm:$0xff]
    %v50 = vld [vmem:[%s1] sm:$0xff]
    %v51 = vld [vmem:[%s1 + $0x8] sm:$0xff]
    %v52 = vld [vmem:[%s1 + $0x10] sm:$0xff]
    %v53 = vld [vmem:[%s1 + $0x18] sm:$0xff]
    %v54 = vld [vmem:[%s1 + $0x20] sm:$0xff]
    %v55 = vld [vmem:[%s1 + $0x28] sm:$0xff]
    %v56 = vld [vmem:[%s1 + $0x30] sm:$0xff]
    %v57 = vld [vmem:[%s1 + $0x38] sm:$0xff]
    %v58 = vld [vmem:[%s1 + $0x40] sm:$0xff]
    %v59 = vld [vmem:[%s1 + $0x48] sm:$0xff]
    %v60 = vld [vmem:[%s1 + $0x50] sm:$0xff]
    %v61 = vld [vmem:[%s1 + $0x58] sm:$0xff]
    %v62 = vld [vmem:[%s1 + $0x60] sm:$0xff]
    %v63 = vld [vmem:[%s1 + $0x68] sm:$0xff]
    %v64 = vld [vmem:[%s1 + $0x70] sm:$0xff]
    %v65 = vld [vmem:[%s1 + $0x78] sm:$0xff]
    %66 = vmatpush.msra.mxu0 %v65
    %67 = vmatpush.msra.mxu0 %v64
    %68 = vmatpush.msra.mxu0 %v63
    %69 = vmatpush.msra.mxu0 %v62
    %70 = vmatpush.msra.mxu0 %v61
    %71 = vmatpush.msra.mxu0 %v60
    %72 = vmatpush.msra.mxu0 %v59
    %73 = vmatpush.msra.mxu0 %v58
    %74 = vmatpush.msra.mxu0 %v57
    %75 = vmatpush.msra.mxu0 %v56
    %76 = vmatpush.msra.mxu0 %v55
    %77 = vmatpush.msra.mxu0 %v54
    %78 = vmatpush.msra.mxu0 %v53
    %79 = vmatpush.msra.mxu0 %v52
    %80 = vmatpush.msra.mxu0 %v51
    %81 = vmatpush.msra.mxu0 %v50
    %82 = vmatmul.f32.gmra.mxu0 %v46
    %v83 = vpop.f32.mrf.mxu0
    %v84 = vadd.f32 0.0, %v83
    %85 = vmatmul.f32.gmra.mxu0 %v47
    %v86 = vpop.f32.mrf.mxu0
    %v87 = vadd.f32 0.0, %v86
    %88 = vdwg.mxu0
    %v89 = vadd.f32 %v48, %v84
    %v90 = vadd.f32 %v49, %v87
    %91 = vst [vmem:[#allocation2] sm:$0xff] %v89
    %92 = vst [vmem:[#allocation2 + $0x8] sm:$0xff] %v90
    %v93 = vld [vmem:[#allocation3] sm:$0xff]
    %v94 = vld [vmem:[#allocation3 + $0x8] sm:$0xff]
    %v95 = vld [vmem:[%s3] sm:$0xff]
    %v96 = vld [vmem:[%s3 + $0x8] sm:$0xff]
    %v97 = vld [vmem:[%s3 + $0x10] sm:$0xff]
    %v98 = vld [vmem:[%s3 + $0x18] sm:$0xff]
    %v99 = vld [vmem:[%s3 + $0x20] sm:$0xff]
    %v100 = vld [vmem:[%s3 + $0x28] sm:$0xff]
    %v101 = vld [vmem:[%s3 + $0x30] sm:$0xff]
    %v102 = vld [vmem:[%s3 + $0x38] sm:$0xff]
    %v103 = vld [vmem:[%s3 + $0x40] sm:$0xff]
    %v104 = vld [vmem:[%s3 + $0x48] sm:$0xff]
    %v105 = vld [vmem:[%s3 + $0x50] sm:$0xff]
    %v106 = vld [vmem:[%s3 + $0x58] sm:$0xff]
    %v107 = vld [vmem:[%s3 + $0x60] sm:$0xff]
    %v108 = vld [vmem:[%s3 + $0x68] sm:$0xff]
    %v109 = vld [vmem:[%s3 + $0x70] sm:$0xff]
    %v110 = vld [vmem:[%s3 + $0x78] sm:$0xff]
    %111 = vmatpush.msra.mxu0 %v110
    %112 = vmatpush.msra.mxu0 %v109
    %113 = vmatpush.msra.mxu0 %v108
    %114 = vmatpush.msra.mxu0 %v107
    %115 = vmatpush.msra.mxu0 %v106
    %116 = vmatpush.msra.mxu0 %v105
    %117 = vmatpush.msra.mxu0 %v104
    %118 = vmatpush.msra.mxu0 %v103
    %119 = vmatpush.msra.mxu0 %v102
    %120 = vmatpush.msra.mxu0 %v101
    %121 = vmatpush.msra.mxu0 %v100
    %122 = vmatpush.msra.mxu0 %v99
    %123 = vmatpush.msra.mxu0 %v98
    %124 = vmatpush.msra.mxu0 %v97
    %125 = vmatpush.msra.mxu0 %v96
    %126 = vmatpush.msra.mxu0 %v95
    %127 = vmatmul.f32.gmra.mxu0 %v46
    %v128 = vpop.f32.mrf.mxu0
    %v129 = vadd.f32 0.0, %v128
    %130 = vmatmul.f32.gmra.mxu0 %v47
    %v131 = vpop.f32.mrf.mxu0
    %v132 = vadd.f32 0.0, %v131
    %133 = vdwg.mxu0
    %v134 = vadd.f32 %v93, %v129
    %v135 = vadd.f32 %v94, %v132
    %vm136 = vcmask 31744
    %137 = vst.msk [vmem:[#allocation3] sm:$0xff] %vm136, %v134
    %138 = vst.msk [vmem:[#allocation3 + $0x8] sm:$0xff] %vm136, %v135
    // Predicated region
    $region30: #{tpu_custom_call.1} parent=1 // pred_check
      %p139 = pneg %p37
    $region31: #{tpu_custom_call.1} parent=1 // pred_check_branch
      %141 = sbr.rel (%p139) target = $region33
    $region32: #{tpu_custom_call.1} parent=1 // pred_region
      %v142 = vld [vmem:[#allocation3] sm:$0xff]
      %v143 = vld [vmem:[#allocation3 + $0x8] sm:$0xff]
      %v144 = vmul.f32 %v142, 0.25
      %v145 = vmul.f32 %v143, 0.25
      %v146 = vld [vmem:[%s4] sm:$0xf]
      %v148 = vsel %vm136, %v144, 0
      %v151 = vsel %vm136, %v145, 0
      %vm153 = vcmask 1043456
      %v155 = vsel %vm153, %v146, 0
      %157 = vmatpush.msra.mxu0 0.0
      %158 = vmatpush.msra.mxu0 0.0
      %159 = vmatpush.msra.mxu0 0.0
      %160 = vmatpush.msra.mxu0 0.0
      %161 = vmatpush.msra.mxu0 0.0
      %162 = vmatpush.msra.mxu0 0.0
      %163 = vmatpush.msra.mxu0 0.0
      %164 = vmatpush.msra.mxu0 0.0
      %165 = vmatpush.msra.mxu0 0.0
      %166 = vmatpush.msra.mxu0 0.0
      %167 = vmatpush.msra.mxu0 0.0
      %168 = vmatpush.msra.mxu0 0.0
      %169 = vmatpush.msra.mxu0 0.0
      %170 = vmatpush.msra.mxu0 0.0
      %171 = vmatpush.msra.mxu0 0.0
      %172 = vmatpush.msra.mxu0 %v155
      %173 = vmatmul.f32.gmra.mxu0 %v148
      %v174 = vpop.f32.mrf.mxu0
      %v175 = vadd.f32 0.0, %v174
      %176 = vmatmul.f32.gmra.mxu0 %v151
      %v177 = vpop.f32.mrf.mxu0
      %v178 = vadd.f32 0.0, %v177
      %179 = vdwg.mxu0
      %v180 = vld [vmem:[#allocation2] sm:$0xff]
      %v181 = vld [vmem:[#allocation2 + $0x8] sm:$0xff]
      %v182 = vld [vmem:[%s2] sm:$0x1]
      %v184 = vperm.slane %v182, 0
      %v186 = vadd.f32 %v180, %v184
      %v187 = vadd.f32 %v181, %v184
      %v188 = vadd.f32 %v186, %v175
      %v189 = vadd.f32 %v187, %v178
      %190 = vst [vmem:[#allocation7] sm:$0xff] %v188
      %191 = vst [vmem:[#allocation7 + $0x8] sm:$0xff] %v189
    $region33: #{tpu_custom_call.1} parent=1 // pred_fallthru
      _
    // Predicated region
    $region34: #{tpu_custom_call.1} parent=1 // pred_check
      _
    $region35: #{tpu_custom_call.1} parent=1 // pred_check_branch
      %193 = sbr.rel (0) target = $region37
    $region36: #{tpu_custom_call.1} parent=1 // pred_region
      %195 = vsyncadd [#allocation6], 0
      %s196 = sshll.u32 [#allocation7], 4
      %s197 = int_to_ptr.vmem [resolvable:$true] %s196
      %s198 = sshll.u32 %s5, 4
      %s199 = int_to_ptr.hbm [resolvable:$true] %s198
      %204 = dma.vmem_to_hbm [thread:$0]  %s197, 256, %s199, [#allocation6], 128, 128, 8
    $region37: #{tpu_custom_call.1} parent=1 // pred_fallthru
      _
    // Predicated region
    $region38: #{tpu_custom_call.1} parent=1 // pred_check
      _
    $region39: #{tpu_custom_call.1} parent=1 // pred_check_branch
      %206 = sbr.rel (0) target = $region41
    $region40: #{tpu_custom_call.1} parent=1 // pred_region
      %208 = dma.done [#allocation6], 256
    $region41: #{tpu_custom_call.1} parent=1 // pred_fallthru
      _
    %209 = vsyncpa [#allocation5], 1
    %210 = vsyncpa [#allocation6], 1

</llo_original>
